<compile_context>
chip_gen: v7x
topology: tpu7x:2x2x1
jax: 0.10.0
libtpu: 0.0.40
codegen_flags: <defaults>
</compile_context>

<pallas_src>
import functools

import jax
import jax.numpy as jnp
import numpy as np
from jax.experimental import pallas as pl
from jax.experimental.pallas import tpu as pltpu


def _pick_row_block(Ho, Wo):
    """Smallest row-slab height TH dividing Ho with TH*Wo a multiple of 128."""
    for th in range(1, Ho + 1):
        if Ho % th == 0 and (th * Wo) % 128 == 0:
            return th
    return Ho  # fall back to whole image (block dim == full dim is always legal)


def _relu_conv_stats_kernel(x_ref, w_ref, y_ref, stats_ref, pad_ref, *,
                            TH, Wo, stride, dilation, KH, KW, padding):
    """Fused ReLU + spatial pad + conv (one K=KH*KW*Cin matmul) + partial BN stats."""
    cin = x_ref.shape[1]
    H = x_ref.shape[2]
    W = x_ref.shape[3]
    r = pl.program_id(1)

    # ReLU in f32, cast to bf16 only for the MXU operand; zero-pad spatially in VMEM.
    if padding > 0:
        pad_ref[...] = jnp.zeros_like(pad_ref)
    pad_ref[:, padding:padding + H, padding:padding + W] = (
        jnp.maximum(x_ref[0], 0.0).astype(pad_ref.dtype))

    # Padded-image rows needed by this output-row slab.
    rows_needed = (TH - 1) * stride + dilation * (KH - 1) + 1
    row0 = pl.multiple_of(r * (TH * stride), TH * stride)
    slab = pad_ref[:, pl.ds(row0, rows_needed), :]          # (Cin, rows_needed, Wp) bf16

    # Gather the KH*KW shifted windows, stacked along a leading (tap*Cin) axis so
    # the whole conv for this slab is a single K = KH*KW*Cin matmul.
    wins = []
    for ki in range(KH):
        for kj in range(KW):
            hi = ki * dilation
            wi = kj * dilation
            if stride == 1:
                win = slab[:, hi:hi + TH, wi:wi + Wo]        # (Cin, TH, Wo)
            else:
                # TODO(synk): stride > 1 path (value-level strided slice) is
                # functionally written but not exercised by the demo config.
                win = jax.lax.slice(
                    slab, (0, hi, wi),
                    (cin, hi + (TH - 1) * stride + 1, wi + (Wo - 1) * stride + 1),
                    (1, stride, stride))
            wins.append(win)
    patches = jnp.concatenate(wins, axis=0)                  # (KH*KW*Cin, TH, Wo) bf16
    patches = patches.reshape(KH * KW * cin, TH * Wo)        # (K, TH*Wo) bf16

    # One MXU matmul: (Cout, K) x (K, TH*Wo) -> (Cout, TH*Wo), f32 accumulation.
    acc = jnp.dot(w_ref[...], patches, preferred_element_type=jnp.float32)

    # Lane-dense, unpadded bf16 store of the conv result slab.
    y_ref[0] = acc.astype(y_ref.dtype)

    # Per-block partial BN statistics from the f32 accumulator (hidden under MXU/DMA).
    s1 = jnp.sum(acc, axis=1, keepdims=True)                 # (Cout, 1)
    s2 = jnp.sum(acc * acc, axis=1, keepdims=True)           # (Cout, 1)
    stats_ref[0, 0] = jnp.concatenate([s1, s2], axis=1)      # (Cout, 2)


def _bn_apply_kernel(y_ref, scale_ref, bias_ref, o_ref):
    # Per-channel affine: (y - mean) * inv * gamma + beta folded into scale/bias (f32).
    o_ref[0] = y_ref[0].astype(jnp.float32) * scale_ref[...] + bias_ref[...]


def relu_conv_bn(x_nchw, weight, gamma, beta, *, stride, padding, dilation, eps=1e-5):
    N, Cin, H, W = x_nchw.shape
    Cout, _, KH, KW = weight.shape
    Ho = (H + 2 * padding - dilation * (KH - 1) - 1) // stride + 1
    Wo = (W + 2 * padding - dilation * (KW - 1) - 1) // stride + 1
    Hp, Wp = H + 2 * padding, W + 2 * padding
    TH = _pick_row_block(Ho, Wo)
    R = Ho // TH

    # weight (Cout, Cin, KH, KW) -> (Cout, KH*KW*Cin) bf16; K order (ki, kj, c)
    # matches the tap-concat order inside the kernel. Tiny, done once.
    w_flat = jnp.transpose(weight, (0, 2, 3, 1)).reshape(Cout, KH * KW * Cin)
    w_flat = w_flat.astype(jnp.bfloat16)

    kernel1 = functools.partial(_relu_conv_stats_kernel, TH=TH, Wo=Wo, stride=stride,
                                dilation=dilation, KH=KH, KW=KW, padding=padding)

    # ---- kernel 1: ReLU + pad + conv-as-one-matmul + partial BN stats ----
    y, stats = pl.pallas_call(
        kernel1,
        out_shape=(jax.ShapeDtypeStruct((N, Cout, Ho * Wo), jnp.bfloat16),
                   jax.ShapeDtypeStruct((N, R, Cout, 2), jnp.float32)),
        grid_spec=pltpu.PrefetchScalarGridSpec(
            num_scalar_prefetch=0,
            grid=(N, R),
            in_specs=[
                pl.BlockSpec((1, Cin, H, W), lambda n, r: (n, 0, 0, 0)),
                pl.BlockSpec((Cout, KH * KW * Cin), lambda n, r: (0, 0)),
            ],
            out_specs=[
                pl.BlockSpec((1, Cout, TH * Wo), lambda n, r: (n, 0, r)),
                pl.BlockSpec((1, 1, Cout, 2), lambda n, r: (n, r, 0, 0)),
            ],
            scratch_shapes=[pltpu.VMEM((Cin, Hp, Wp), jnp.bfloat16)],
        ),
        compiler_params=pltpu.CompilerParams(
            dimension_semantics=("parallel", "parallel")),
    )(x_nchw, w_flat)

    # ---- finish BN stats (tiny (Cout, 2) math) and fold into scale/bias ----
    count = jnp.float32(N * Ho * Wo)
    tot = jnp.sum(stats, axis=(0, 1))                       # (Cout, 2)
    mean = tot[:, 0] / count
    var = jnp.maximum(tot[:, 1] / count - mean * mean, 0.0)  # biased var (PyTorch)
    inv = jax.lax.rsqrt(var + eps)
    g32 = gamma.astype(jnp.float32)
    b32 = beta.astype(jnp.float32)
    scale = (g32 * inv).reshape(Cout, 1)
    bias = (b32 - mean * g32 * inv).reshape(Cout, 1)

    # ---- kernel 2: tiled, lane-dense BN affine apply ----
    out = pl.pallas_call(
        _bn_apply_kernel,
        out_shape=jax.ShapeDtypeStruct((N, Cout, Ho * Wo), jnp.float32),
        grid_spec=pltpu.PrefetchScalarGridSpec(
            num_scalar_prefetch=0,
            grid=(N, R),
            in_specs=[
                pl.BlockSpec((1, Cout, TH * Wo), lambda n, r: (n, 0, r)),
                pl.BlockSpec((Cout, 1), lambda n, r: (0, 0)),
                pl.BlockSpec((Cout, 1), lambda n, r: (0, 0)),
            ],
            out_specs=pl.BlockSpec((1, Cout, TH * Wo), lambda n, r: (n, 0, r)),
        ),
        compiler_params=pltpu.CompilerParams(
            dimension_semantics=("parallel", "parallel")),
    )(y, scale, bias)

    # Pure reshape (no transpose, no slice): (N, Cout, Ho*Wo) -> NCHW.
    return out.reshape(N, Cout, Ho, Wo)


def _reference(x_nchw, weight, gamma, beta, *, stride, padding, dilation, eps=1e-5):
    # float64 numpy reference of ReLU -> conv -> train-mode BN (sanity only).
    x = np.asarray(x_nchw, dtype=np.float64)
    w = np.asarray(weight, dtype=np.float64)
    g = np.asarray(gamma, dtype=np.float64)
    b = np.asarray(beta, dtype=np.float64)
    N, Cin, H, W = x.shape
    Cout, _, KH, KW = w.shape
    Ho = (H + 2 * padding - dilation * (KH - 1) - 1) // stride + 1
    Wo = (W + 2 * padding - dilation * (KW - 1) - 1) // stride + 1
    xr = np.maximum(x, 0.0)
    xp = np.pad(xr, ((0, 0), (0, 0), (padding, padding), (padding, padding)))
    y = np.zeros((N, Cout, Ho, Wo), dtype=np.float64)
    for ki in range(KH):
        for kj in range(KW):
            hi, wi = ki * dilation, kj * dilation
            patch = xp[:, :, hi:hi + stride * Ho:stride, wi:wi + stride * Wo:stride]
            y += np.einsum('ncHW,oc->noHW', patch, w[:, :, ki, kj])
    mean = y.mean(axis=(0, 2, 3), keepdims=True)
    var = ((y - mean) ** 2).mean(axis=(0, 2, 3), keepdims=True)
    return (y - mean) / np.sqrt(var + eps) * g.reshape(1, -1, 1, 1) + b.reshape(1, -1, 1, 1)


if __name__ == "__main__":
    # Module config: ReLUConvBN(in=4, out=8, kernel=3, stride=1, padding=1,
    #                           dilation=1, affine=True, use_bn=True)
    # affine=True -> conv has no bias; BN has gamma/beta.
    N, Cin, H, W = 2, 4, 16, 16
    Cout, K = 8, 3
    stride, padding, dilation = 1, 1, 1

    key = jax.random.PRNGKey(0)
    kx, kw, kg, kb = jax.random.split(key, 4)
    x = jax.random.normal(kx, (N, Cin, H, W), dtype=jnp.float32)
    weight = jax.random.normal(kw, (Cout, Cin, K, K), dtype=jnp.float32) * 0.1
    gamma = jax.random.normal(kg, (Cout,), dtype=jnp.float32) * 0.1 + 1.0
    beta = jax.random.normal(kb, (Cout,), dtype=jnp.float32) * 0.1

    out = relu_conv_bn(x, weight, gamma, beta,
                       stride=stride, padding=padding, dilation=dilation)
    out = jax.block_until_ready(out)

    ref = _reference(x, weight, gamma, beta,
                     stride=stride, padding=padding, dilation=dilation)
    assert out.shape == (N, Cout, H, W)
    # bf16 MXU operands + bf16 intermediate -> loose tolerance vs f64 reference.
    assert np.allclose(np.asarray(out), ref, atol=5e-2, rtol=5e-2)
    print("KERNEL_OK")
</pallas_src>

<mosaic_0001>
module attributes {stable_mosaic.version = 11 : i64} {
  func.func @_relu_conv_stats_kernel(%arg0: i32, %arg1: i32, %arg2: memref<1x4x16x16xf32, #tpu.memory_space<vmem>>, %arg3: memref<8x36xbf16, #tpu.memory_space<vmem>>, %arg4: memref<1x8x128xbf16, #tpu.memory_space<vmem>>, %arg5: memref<1x1x8x2xf32, #tpu.memory_space<vmem>>, %arg6: memref<4x18x18xbf16, #tpu.memory_space<vmem>>) attributes {dimension_semantics = [#tpu.dimension_semantics<parallel>, #tpu.dimension_semantics<parallel>], iteration_bounds = array<i64: 2, 2>, scalar_prefetch = 0 : i64, scratch_operands = 1 : i64, tpu.core_type = #tpu.core_type<tc>, window_params = [{transform_indices = @transform_0, window_bounds = array<i64: 1, 4, 16, 16>}, {pipeline_mode = #tpu.pipeline_mode<synchronous>, transform_indices = @transform_1, window_bounds = array<i64: 8, 36>}, {transform_indices = @transform_2, window_bounds = array<i64: 1, 8, 128>}, {transform_indices = @transform_3, window_bounds = array<i64: 1, 1, 8, 2>}]} {
    %cst = arith.constant 0.000000e+00 : bf16
    %0 = vector.broadcast %cst : bf16 to vector<4x18x18xbf16>
    %c0 = arith.constant 0 : index
    %c0_0 = arith.constant 0 : index
    %c0_1 = arith.constant 0 : index
    %1 = vector.load %arg6[%c0, %c0_0, %c0_1] : memref<4x18x18xbf16, #tpu.memory_space<vmem>>, vector<4x18x18xbf16>
    tpu.vector_store %arg6[%c0, %c0_0, %c0_1], %0 {strides = array<i32>} : memref<4x18x18xbf16, #tpu.memory_space<vmem>>, vector<4x18x18xbf16>,
    %c0_2 = arith.constant 0 : index
    %c0_3 = arith.constant 0 : index
    %c0_4 = arith.constant 0 : index
    %c0_5 = arith.constant 0 : index
    %2 = vector.load %arg2[%c0_2, %c0_3, %c0_4, %c0_5] : memref<1x4x16x16xf32, #tpu.memory_space<vmem>>, vector<1x4x16x16xf32>
    %3 = vector.shape_cast %2 : vector<1x4x16x16xf32> to vector<4x16x16xf32>
    %cst_6 = arith.constant 0.000000e+00 : f32
    %4 = vector.broadcast %cst_6 : f32 to vector<4x16x16xf32>
    %5 = arith.maximumf %3, %4 : vector<4x16x16xf32>
    %6 = arith.truncf %5 : vector<4x16x16xf32> to vector<4x16x16xbf16>
    %c0_7 = arith.constant 0 : index
    %c1 = arith.constant 1 : index
    %c1_8 = arith.constant 1 : index
    %7 = vector.load %arg6[%c0_7, %c1, %c1_8] : memref<4x18x18xbf16, #tpu.memory_space<vmem>>, vector<4x16x16xbf16>
    tpu.vector_store %arg6[%c0_7, %c1, %c1_8], %6 {strides = array<i32>} : memref<4x18x18xbf16, #tpu.memory_space<vmem>>, vector<4x16x16xbf16>,
    %c8_i32 = arith.constant 8 : i32
    %8 = arith.muli %arg1, %c8_i32 : i32
    %9 = tpu.assume_multiple %8, 8 : i32
    %c0_9 = arith.constant 0 : index
    %10 = arith.index_cast %9 : i32 to index
    %c0_10 = arith.constant 0 : index
    %11 = vector.load %arg6[%c0_9, %10, %c0_10] : memref<4x18x18xbf16, #tpu.memory_space<vmem>>, vector<4x10x18xbf16>
    %12 = vector.extract_strided_slice %11 {offsets = [0, 0, 0], sizes = [4, 8, 16], strides = [1, 1, 1]} : vector<4x10x18xbf16> to vector<4x8x16xbf16>
    %13 = vector.extract_strided_slice %11 {offsets = [0, 0, 1], sizes = [4, 8, 16], strides = [1, 1, 1]} : vector<4x10x18xbf16> to vector<4x8x16xbf16>
    %14 = vector.extract_strided_slice %11 {offsets = [0, 0, 2], sizes = [4, 8, 16], strides = [1, 1, 1]} : vector<4x10x18xbf16> to vector<4x8x16xbf16>
    %15 = vector.extract_strided_slice %11 {offsets = [0, 1, 0], sizes = [4, 8, 16], strides = [1, 1, 1]} : vector<4x10x18xbf16> to vector<4x8x16xbf16>
    %16 = vector.extract_strided_slice %11 {offsets = [0, 1, 1], sizes = [4, 8, 16], strides = [1, 1, 1]} : vector<4x10x18xbf16> to vector<4x8x16xbf16>
    %17 = vector.extract_strided_slice %11 {offsets = [0, 1, 2], sizes = [4, 8, 16], strides = [1, 1, 1]} : vector<4x10x18xbf16> to vector<4x8x16xbf16>
    %18 = vector.extract_strided_slice %11 {offsets = [0, 2, 0], sizes = [4, 8, 16], strides = [1, 1, 1]} : vector<4x10x18xbf16> to vector<4x8x16xbf16>
    %19 = vector.extract_strided_slice %11 {offsets = [0, 2, 1], sizes = [4, 8, 16], strides = [1, 1, 1]} : vector<4x10x18xbf16> to vector<4x8x16xbf16>
    %20 = vector.extract_strided_slice %11 {offsets = [0, 2, 2], sizes = [4, 8, 16], strides = [1, 1, 1]} : vector<4x10x18xbf16> to vector<4x8x16xbf16>
    %21 = tpu.concatenate %12, %13, %14, %15, %16, %17, %18, %19, %20 in 0 : vector<4x8x16xbf16>, vector<4x8x16xbf16>, vector<4x8x16xbf16>, vector<4x8x16xbf16>, vector<4x8x16xbf16>, vector<4x8x16xbf16>, vector<4x8x16xbf16>, vector<4x8x16xbf16>, vector<4x8x16xbf16> -> vector<36x8x16xbf16>
    %22 = vector.shape_cast %21 : vector<36x8x16xbf16> to vector<36x128xbf16>
    %c0_11 = arith.constant 0 : index
    %c0_12 = arith.constant 0 : index
    %23 = vector.load %arg3[%c0_11, %c0_12] : memref<8x36xbf16, #tpu.memory_space<vmem>>, vector<8x36xbf16>
    %cst_13 = arith.constant dense<0.000000e+00> : vector<8x128xf32>
    %24 = tpu.matmul %23, %22, %cst_13 {dimension_numbers = #tpu.dot_dimension_numbers<[1], [0], [0], [1], [0, 0, 1, 1], [], []>} : vector<8x36xbf16>, vector<36x128xbf16>, vector<8x128xf32> -> vector<8x128xf32>
    %25 = arith.truncf %24 : vector<8x128xf32> to vector<8x128xbf16>
    %c0_14 = arith.constant 0 : index
    %c0_15 = arith.constant 0 : index
    %c0_16 = arith.constant 0 : index
    %26 = vector.load %arg4[%c0_14, %c0_15, %c0_16] : memref<1x8x128xbf16, #tpu.memory_space<vmem>>, vector<1x8x128xbf16>
    %27 = vector.shape_cast %26 : vector<1x8x128xbf16> to vector<8x128xbf16>
    %28 = vector.shape_cast %25 : vector<8x128xbf16> to vector<1x8x128xbf16>
    tpu.vector_store %arg4[%c0_14, %c0_15, %c0_16], %28 {strides = array<i32>} : memref<1x8x128xbf16, #tpu.memory_space<vmem>>, vector<1x8x128xbf16>,
    %cst_17 = arith.constant dense<0.000000e+00> : vector<8xf32>
    %29 = vector.multi_reduction <add>, %24, %cst_17 [1] : vector<8x128xf32> to vector<8xf32>
    %30 = vector.shape_cast %29 : vector<8xf32> to vector<8x1xf32>
    %31 = arith.mulf %24, %24 : vector<8x128xf32>
    %cst_18 = arith.constant dense<0.000000e+00> : vector<8xf32>
    %32 = vector.multi_reduction <add>, %31, %cst_18 [1] : vector<8x128xf32> to vector<8xf32>
    %33 = vector.shape_cast %32 : vector<8xf32> to vector<8x1xf32>
    %34 = tpu.concatenate %30, %33 in 1 : vector<8x1xf32>, vector<8x1xf32> -> vector<8x2xf32>
    %c0_19 = arith.constant 0 : index
    %c0_20 = arith.constant 0 : index
    %c0_21 = arith.constant 0 : index
    %c0_22 = arith.constant 0 : index
    %35 = vector.load %arg5[%c0_19, %c0_20, %c0_21, %c0_22] : memref<1x1x8x2xf32, #tpu.memory_space<vmem>>, vector<1x1x8x2xf32>
    %36 = vector.shape_cast %35 : vector<1x1x8x2xf32> to vector<8x2xf32>
    %37 = vector.shape_cast %34 : vector<8x2xf32> to vector<1x1x8x2xf32>
    tpu.vector_store %arg5[%c0_19, %c0_20, %c0_21, %c0_22], %37 {strides = array<i32>} : memref<1x1x8x2xf32, #tpu.memory_space<vmem>>, vector<1x1x8x2xf32>,
    return
  }
  func.func @transform_0(%arg0: i32, %arg1: i32) -> (i32, i32, i32, i32) {
    %c0_i32 = arith.constant 0 : i32
    %c0_i32_0 = arith.constant 0 : i32
    %c0_i32_1 = arith.constant 0 : i32
    %c0_i32_2 = arith.constant 0 : i32
    return %arg0, %c0_i32, %c0_i32_0, %c0_i32_1 : i32, i32, i32, i32
  }
  func.func @transform_1(%arg0: i32, %arg1: i32) -> (i32, i32) {
    %c0_i32 = arith.constant 0 : i32
    %c0_i32_0 = arith.constant 0 : i32
    %c0_i32_1 = arith.constant 0 : i32
    return %c0_i32, %c0_i32_0 : i32, i32
  }
  func.func @transform_2(%arg0: i32, %arg1: i32) -> (i32, i32, i32) {
    %c0_i32 = arith.constant 0 : i32
    %c0_i32_0 = arith.constant 0 : i32
    return %arg0, %c0_i32, %arg1 : i32, i32, i32
  }
  func.func @transform_3(%arg0: i32, %arg1: i32) -> (i32, i32, i32, i32) {
    %c0_i32 = arith.constant 0 : i32
    %c0_i32_0 = arith.constant 0 : i32
    %c0_i32_1 = arith.constant 0 : i32
    return %arg0, %arg1, %c0_i32, %c0_i32_0 : i32, i32, i32, i32
  }
}

</mosaic_0001>

<llo_original>
// kernel: tpu_custom_call.1
$region0: #{tpu_custom_call.1}
  #allocation0 [shape = 'u32[]', space=smem, size = 0x4, offset = 0x4, fixed_abs, tag = 'smem constant byte address 0x4 - core index']
  #allocation1 [shape = 'u32[144,128]{1,0:T(1,128)}', space=vmem, size = 0x12000, scoped, tag = 'internal scratch']
  #allocation2 [shape = 'bf16[4,18,18]{2,1,0:T(8,128)(2,1)}', space=vmem, size = 0x6000, scoped, tag = 'scratch operand']
  %s0 = inlined_call_operand.hbm [shape: f32[2,4,16,16], index: 0, kind: input, shape index: {}]
  %s1 = inlined_call_operand.hbm [shape: bf16[8,36], index: 1, kind: input, shape index: {}]
  %s2 = inlined_call_operand.hbm [shape: bf16[2,8,256], index: 2, kind: output, shape index: {0}]
  %s3 = inlined_call_operand.vmem [shape: f32[2,2,8,2], index: 3, kind: output, shape index: {1}]
  %4 = xla_tuple %s2, %s3
  %s5 = sld [smem:[#allocation0]]
  $region57: #{tpu_custom_call.1} parent=0
    _
  %s7 = ssub.s32 1, %s5
  %s8 = scalar_select 0, %s7, %s5
  $region1: #{tpu_custom_call.1} parent=0
    #allocation3 [shape = 'u8[65536]{0}', space=vmem, size = 0x10000, scoped, tag = 'input window, operand 0']
    #allocation4 [shape = 's32[2]{0}', space=sflag, size = 0x8, scoped, tag = 'scoped memory for tpu_custom_call.1']
    #allocation5 [shape = 's32[2]{0}', space=sflag, size = 0x8, scoped, tag = 'scoped memory for tpu_custom_call.1']
    #allocation6 [shape = 'u8[2048]{0}', space=vmem, size = 0x800, scoped, tag = 'input window, operand 1, single buffered']
    #allocation7 [shape = 's32[1]{0}', space=sflag, size = 0x4, scoped, tag = 'scoped memory for tpu_custom_call.1']
    #allocation8 [shape = 'u8[4096]{0}', space=vmem, size = 0x1000, scoped, tag = 'output window, operand 0']
    %9 = vsyncpa [#allocation4], 0
    %s10 = scalar_lea.sflag [#allocation4], 1
    %11 = vsyncpa %s10, 0
    %12 = vsyncpa [#allocation7], 0
    %13 = vsyncpa [#allocation5], 0
    %s14 = scalar_lea.sflag [#allocation5], 1
    %15 = vsyncpa %s14, 0
    loop: start=0, step=1, limit=6
    $region2: #{tpu_custom_call.1} parent=1 // loop_pre_header
      _
    $region3: #{tpu_custom_call.1} parent=1 // loop_header
      %s17 = sphi 0, %s21
      %p18 = scmp.ge.s32.totalorder %s17, 6
      %s24 = sphi 0, %s36
      %s25 = sphi 0, %s32
      %s26 = sphi 0, %s24
      %s27 = sphi 0, %s25
      %s28 = sphi 0, %s26
      %s29 = sphi 0, %s27
      %s39 = sphi 0, %s41
      %s42 = sphi 0, %s39
      %s43 = sphi 0, %s42
      %s59 = sphi 0, %s43
      %s63 = sphi 0, %s63
      %s65 = sphi 0, %s63
      %s66 = sphi 0, %s65
      %s80 = sphi 0, %s66
      %s88 = sphi 0, %s90
      %s91 = sphi 0, %s88
      %s92 = sphi 0, %s91
      %s108 = sphi 0, %s92
      %s116 = sphi 0, %s118
      %s119 = sphi 0, %s116
      %s120 = sphi 0, %s119
      %s136 = sphi 0, %s120
    $region4: #{tpu_custom_call.1} parent=1 // loop_header_branch
      %20 = sbr.rel (%p18) target = $region8
    $region5: #{tpu_custom_call.1} parent=1 // loop_body
      %s22 = ssub.s32 %s17, 1
      %s23 = ssub.s32 %s17, 2
      %s30 = sadd.s32 1, %s25
      %p31 = scmp.ge.s32.totalorder %s30, 2
      %s32 = scalar_select %p31, 0, %s30
      %s33 = sadd.s32 1, %s24
      %s34 = scalar_select %p31, %s33, %s24
      %p35 = scmp.ge.s32.totalorder %s34, 2
      %s36 = scalar_select %p35, 0, %s34
      %s37 = ssub.s32 %s24, %s36
      %p38 = scmp.eq.s32.totalorder %s37, 0
      %s40 = sadd.s32 %s39, 1
      %s41 = scalar_select %p38, %s39, %s40
      %p44 = pneg %p38
      %p45 = scmp.eq.s32.totalorder %s17, 3
      %p46 = por %p44, %p45
      %p47 = scmp.ne.s32.totalorder %s39, %s42
      %p48 = scmp.eq.s32.totalorder %s17, 0
      %p49 = por %p47, %p48
      %p50 = scmp.ne.s32.totalorder %s39, %s42
      %p51 = scmp.eq.s32.totalorder %s22, 3
      %p52 = por %p50, %p51
      %p53 = scmp.ne.s32.totalorder %s42, %s43
      %p54 = scmp.eq.s32.totalorder %s22, 0
      %p55 = por %p53, %p54
      %p56 = scmp.ne.s32.totalorder %s42, %s43
      %p57 = scmp.eq.s32.totalorder %s23, 3
      %p58 = por %p56, %p57
      %p60 = scmp.ne.s32.totalorder %s43, %s59
      %p61 = scmp.eq.s32.totalorder %s23, 0
      %p62 = por %p60, %p61
      %s64 = sadd.s32 %s63, 1
      %p67 = scmp.eq.s32.totalorder %s17, 3
      %p68 = scmp.ne.s32.totalorder %s63, %s65
      %p69 = scmp.eq.s32.totalorder %s17, 0
      %p70 = por %p68, %p69
      %p71 = scmp.ne.s32.totalorder %s63, %s65
      %p72 = scmp.eq.s32.totalorder %s22, 3
      %p73 = por %p71, %p72
      %p74 = scmp.ne.s32.totalorder %s65, %s66
      %p75 = scmp.eq.s32.totalorder %s22, 0
      %p76 = por %p74, %p75
      %p77 = scmp.ne.s32.totalorder %s65, %s66
      %p78 = scmp.eq.s32.totalorder %s23, 3
      %p79 = por %p77, %p78
      %p81 = scmp.ne.s32.totalorder %s66, %s80
      %p82 = scmp.eq.s32.totalorder %s23, 0
      %p83 = por %p81, %p82
      %s84 = ssub.s32 %s24, %s36
      %s85 = ssub.s32 %s25, %s32
      %s86 = sor.u32 %s84, %s85
      %p87 = scmp.eq.s32.totalorder %s86, 0
      %s89 = sadd.s32 %s88, 1
      %s90 = scalar_select %p87, %s88, %s89
      %p93 = pneg %p87
      %p94 = scmp.eq.s32.totalorder %s17, 3
      %p95 = por %p93, %p94
      %p96 = scmp.ne.s32.totalorder %s88, %s91
      %p97 = scmp.eq.s32.totalorder %s17, 0
      %p98 = por %p96, %p97
      %p99 = scmp.ne.s32.totalorder %s88, %s91
      %p100 = scmp.eq.s32.totalorder %s22, 3
      %p101 = por %p99, %p100
      %p102 = scmp.ne.s32.totalorder %s91, %s92
      %p103 = scmp.eq.s32.totalorder %s22, 0
      %p104 = por %p102, %p103
      %p105 = scmp.ne.s32.totalorder %s91, %s92
      %p106 = scmp.eq.s32.totalorder %s23, 3
      %p107 = por %p105, %p106
      %p109 = scmp.ne.s32.totalorder %s92, %s108
      %p110 = scmp.eq.s32.totalorder %s23, 0
      %p111 = por %p109, %p110
      %s112 = ssub.s32 %s24, %s36
      %s113 = ssub.s32 %s25, %s32
      %s114 = sor.u32 %s112, %s113
      %p115 = scmp.eq.s32.totalorder %s114, 0
      %s117 = sadd.s32 %s116, 1
      %s118 = scalar_select %p115, %s116, %s117
      %p121 = pneg %p115
      %p122 = scmp.eq.s32.totalorder %s17, 3
      %p123 = por %p121, %p122
      %p124 = scmp.ne.s32.totalorder %s116, %s119
      %p125 = scmp.eq.s32.totalorder %s17, 0
      %p126 = por %p124, %p125
      %p127 = scmp.ne.s32.totalorder %s116, %s119
      %p128 = scmp.eq.s32.totalorder %s22, 3
      %p129 = por %p127, %p128
      %p130 = scmp.ne.s32.totalorder %s119, %s120
      %p131 = scmp.eq.s32.totalorder %s22, 0
      %p132 = por %p130, %p131
      %p133 = scmp.ne.s32.totalorder %s119, %s120
      %p134 = scmp.eq.s32.totalorder %s23, 3
      %p135 = por %p133, %p134
      %p137 = scmp.ne.s32.totalorder %s120, %s136
      %p138 = scmp.eq.s32.totalorder %s23, 0
      %p139 = por %p137, %p138
      %p140 = scmp.le.s32.totalorder 1, %s17
      %p141 = scmp.lt.s32.totalorder %s17, 5
      %p142 = pnand %p140, %p141
      %p143 = pneg %p142
      // Predicated region
      $region9: #{tpu_custom_call.1} parent=5 // pred_check
        _
      $region10: #{tpu_custom_call.1} parent=5 // pred_check_branch
        %145 = sbr.rel (%p142) target = $region12
      $region11: #{tpu_custom_call.1} parent=5 // pred_region
        %s146 = ssub.s32 %s17, 1
        // Predicated region
        $region13: #{tpu_custom_call.1} parent=11 // pred_check
          %p147 = pneg %p76
        $region14: #{tpu_custom_call.1} parent=11 // pred_check_branch
          %149 = sbr.rel (%p147) target = $region16
        $region15: #{tpu_custom_call.1} parent=11 // pred_region
          %s151 = ssub.s32 64, 64
          %152 = vsyncadd [#allocation7], %s151
          %s154 = sshll.u32 [#allocation6], 4
          %s155 = int_to_ptr.vmem [resolvable:$true] %s154
          %157 = dma.hbm_to_vmem [thread:$0]  %s1, 64, %s155, [#allocation7]
        $region16: #{tpu_custom_call.1} parent=11 // pred_fallthru
          _
      $region12: #{tpu_custom_call.1} parent=5 // pred_fallthru
        _
      %p158 = scmp.lt.s32.totalorder %s17, 4
      // Predicated region
      $region17: #{tpu_custom_call.1} parent=5 // pred_check
        %p159 = pneg %p158
      $region18: #{tpu_custom_call.1} parent=5 // pred_check_branch
        %161 = sbr.rel (%p159) target = $region20
      $region19: #{tpu_custom_call.1} parent=5 // pred_region
        // Predicated region
        $region21: #{tpu_custom_call.1} parent=19 // pred_check
          %p162 = pneg %p49
        $region22: #{tpu_custom_call.1} parent=19 // pred_check_branch
          %164 = sbr.rel (%p162) target = $region24
        $region23: #{tpu_custom_call.1} parent=19 // pred_region
          %s165 = sand.u32 %s39, 1
          %s166 = scalar_lea.sflag [#allocation4], %s165
          %s167 = sand.u32 %s39, 1
          %s168 = smul.addr %s167, 64
          %s169 = scalar_lea.vmem [#allocation3], %s168
          %s171 = ssub.s32 1024, 1024
          %172 = vsyncadd %s166, %s171
          %s173 = smul.addr %s24, 8
          %s174 = smul.addr %s173, 128
          %s175 = scalar_lea.hbm %s0, %s174
          %s176 = sshll.u32 %s169, 4
          %s177 = int_to_ptr.vmem [resolvable:$true] %s176
          %182 = dma.hbm_to_vmem [thread:$0]  %s175, 1024, %s177, %s166, 128, 128, 8
        $region24: #{tpu_custom_call.1} parent=19 // pred_fallthru
          _
      $region20: #{tpu_custom_call.1} parent=5 // pred_fallthru
        _
      %p183 = scmp.le.s32.totalorder 1, %s17
      %p184 = scmp.lt.s32.totalorder %s17, 5
      %p185 = pnand %p183, %p184
      %p186 = pneg %p185
      // Predicated region
      $region25: #{tpu_custom_call.1} parent=5 // pred_check
        _
      $region26: #{tpu_custom_call.1} parent=5 // pred_check_branch
        %188 = sbr.rel (%p185) target = $region28
      $region27: #{tpu_custom_call.1} parent=5 // pred_region
        %s189 = ssub.s32 %s17, 1
        %s190 = sand.u32 %s42, 1
        %s191 = scalar_lea.sflag [#allocation4], %s190
        %s192 = sand.u32 %s42, 1
        %s193 = smul.addr %s192, 64
        %s194 = scalar_lea.vmem [#allocation3], %s193
        // Predicated region
        $region29: #{tpu_custom_call.1} parent=27 // pred_check
          %p195 = pneg %p55
        $region30: #{tpu_custom_call.1} parent=27 // pred_check_branch
          %197 = sbr.rel (%p195) target = $region32
        $region31: #{tpu_custom_call.1} parent=27 // pred_region
          %198 = dma.done %s191, 1024
        $region32: #{tpu_custom_call.1} parent=27 // pred_fallthru
          _
        // Predicated region
        $region33: #{tpu_custom_call.1} parent=27 // pred_check
          %p199 = pneg %p76
        $region34: #{tpu_custom_call.1} parent=27 // pred_check_branch
          %201 = sbr.rel (%p199) target = $region36
        $region35: #{tpu_custom_call.1} parent=27 // pred_region
          %202 = dma.done [#allocation7], 64
        $region36: #{tpu_custom_call.1} parent=27 // pred_fallthru
          _
        %s203 = sand.u32 %s42, 1
        %s204 = scalar_lea.sflag [#allocation4], %s203
        %s205 = sand.u32 %s42, 1
        %s206 = smul.addr %s205, 64
        %s207 = scalar_lea.vmem [#allocation3], %s206
        %p208 = pneg %p55
        %p209 = pneg %p52
        %p210 = pneg %p76
        %p211 = pneg %p73
        %p212 = pneg %p104
        %p213 = pneg %p101
        %s214 = sand.u32 %s91, 1
        %s215 = scalar_lea.sflag [#allocation5], %s214
        %s216 = sand.u32 %s91, 1
        %s217 = smul.addr %s216, 4
        %s218 = scalar_lea.vmem [#allocation8], %s217
        %p219 = pneg %p132
        %p220 = pneg %p129
        %p221 = scmp.lt.s32.totalorder %s26, 1
        %s222 = scalar_select %p221, %s26, 1
        %p223 = scmp.lt.s32.totalorder %s27, 1
        %s224 = scalar_select %p223, %s27, 1
        %s225 = smul.addr %s222, 2
        %s226 = sadd.s32 %s224, %s225
        %s227 = smul.addr %s226, 8
        %s228 = scalar_lea.vmem %s3, %s227
        %p229 = scmp.lt.s32.totalorder %s26, 1
        %s230 = scalar_select %p229, %s26, 1
        %p231 = scmp.lt.s32.totalorder %s27, 1
        %s232 = scalar_select %p231, %s27, 1
        %s233 = smul.addr %s230, 2
        %s234 = sadd.s32 %s232, %s233
        %s235 = smul.addr %s234, 8
        %s236 = scalar_lea.vmem %s3, %s235
        %vm238 = vcmask 142336
        %239 = vst.msk [vmem:[#allocation2] sm:$0xf] %vm238, 0
        %240 = vst.msk [vmem:[#allocation2 + $0x4] sm:$0xf] %vm238, 0
        %vm241 = vcmask 139264
        %242 = vst.msk [vmem:[#allocation2 + $0x8] sm:$0x1] %vm241, 0
        %243 = vst.msk [vmem:[#allocation2 + $0xc] sm:$0xf] %vm238, 0
        %244 = vst.msk [vmem:[#allocation2 + $0x10] sm:$0xf] %vm238, 0
        %245 = vst.msk [vmem:[#allocation2 + $0x14] sm:$0x1] %vm241, 0
        %246 = vst.msk [vmem:[#allocation2 + $0x18] sm:$0xf] %vm238, 0
        %247 = vst.msk [vmem:[#allocation2 + $0x1c] sm:$0xf] %vm238, 0
        %248 = vst.msk [vmem:[#allocation2 + $0x20] sm:$0x1] %vm241, 0
        %249 = vst.msk [vmem:[#allocation2 + $0x24] sm:$0xf] %vm238, 0
        %250 = vst.msk [vmem:[#allocation2 + $0x28] sm:$0xf] %vm238, 0
        %251 = vst.msk [vmem:[#allocation2 + $0x2c] sm:$0x1] %vm241, 0
        %v252 = vld [vmem:[%s194] sm:$0xff]
        %v253 = vld [vmem:[%s194 + $0x8] sm:$0xff]
        %v254 = vld [vmem:[%s194 + $0x10] sm:$0xff]
        %v255 = vld [vmem:[%s194 + $0x18] sm:$0xff]
        %v256 = vld [vmem:[%s194 + $0x20] sm:$0xff]
        %v257 = vld [vmem:[%s194 + $0x28] sm:$0xff]
        %v258 = vld [vmem:[%s194 + $0x30] sm:$0xff]
        %v259 = vld [vmem:[%s194 + $0x38] sm:$0xff]
        %v260 = vmax.f32 %v252, 0.0
        %v261 = vmax.f32 %v253, 0.0
        %v262 = vmax.f32 %v254, 0.0
        %v263 = vmax.f32 %v255, 0.0
        %v264 = vmax.f32 %v256, 0.0
        %v265 = vmax.f32 %v257, 0.0
        %v266 = vmax.f32 %v258, 0.0
        %v267 = vmax.f32 %v259, 0.0
        %v268 = vpack.c.bf16 %v261, %v260
        %v269 = vpack.c.bf16 %v263, %v262
        %v270 = vpack.c.bf16 %v265, %v264
        %v271 = vpack.c.bf16 %v267, %v266
        %v276 = vunpack.c.l.b16 %v268
        %v277 = vunpack.c.h.b16 %v268
        %v278 = vunpack.c.l.b16 %v269
        %v279 = vunpack.c.h.b16 %v269
        %v280 = vunpack.c.l.b16 %v270
        %v281 = vunpack.c.h.b16 %v270
        %v282 = vunpack.c.l.b16 %v271
        %v283 = vunpack.c.h.b16 %v271
        %v284 = vpack.c.b16 %v276, %v276
        %v285 = vpack.c.b16 %v277, %v277
        %v286 = vpack.c.b16 %v278, %v278
        %v287 = vpack.c.b16 %v279, %v279
        %v288 = vpack.c.b16 %v280, %v280
        %v289 = vpack.c.b16 %v281, %v281
        %v290 = vpack.c.b16 %v282, %v282
        %v291 = vpack.c.b16 %v283, %v283
        %vm292 = vsmask.f32 256
        %vm293 = vsmask.f32 4368
        %vm294 = vmor %vm292, %vm293
        %v296 = vshrl.u32 %v284, 16
        %v298 = vrot.slane %v296, 7
        %v299 = vshll.u32 %v284, 16
        %v301 = vor.u32 %v298, %v299
        %v302 = vrot.slane %v298, 4
        %v304 = vshrl.u32 %v285, 16
        %v306 = vrot.slane %v304, 7
        %v307 = vshll.u32 %v285, 16
        %v309 = vor.u32 %v306, %v307
        %v310 = vsel %vm294, %v302, %v309
        %v311 = vrot.slane %v306, 4
        %v313 = vshrl.u32 %v286, 16
        %v315 = vrot.slane %v313, 7
        %v316 = vshll.u32 %v286, 16
        %v318 = vor.u32 %v315, %v316
        %v319 = vrot.slane %v315, 4
        %v321 = vshrl.u32 %v287, 16
        %v323 = vrot.slane %v321, 7
        %v324 = vshll.u32 %v287, 16
        %v326 = vor.u32 %v323, %v324
        %v327 = vsel %vm294, %v319, %v326
        %v328 = vrot.slane %v323, 4
        %v330 = vshrl.u32 %v288, 16
        %v332 = vrot.slane %v330, 7
        %v333 = vshll.u32 %v288, 16
        %v335 = vor.u32 %v332, %v333
        %v336 = vrot.slane %v332, 4
        %v338 = vshrl.u32 %v289, 16
        %v340 = vrot.slane %v338, 7
        %v341 = vshll.u32 %v289, 16
        %v343 = vor.u32 %v340, %v341
        %v344 = vsel %vm294, %v336, %v343
        %v345 = vrot.slane %v340, 4
        %v347 = vshrl.u32 %v290, 16
        %v349 = vrot.slane %v347, 7
        %v350 = vshll.u32 %v290, 16
        %v352 = vor.u32 %v349, %v350
        %v353 = vrot.slane %v349, 4
        %v355 = vshrl.u32 %v291, 16
        %v357 = vrot.slane %v355, 7
        %v358 = vshll.u32 %v291, 16
        %v360 = vor.u32 %v357, %v358
        %v361 = vsel %vm294, %v353, %v360
        %v362 = vrot.slane %v357, 4
        %363 = vrot.lane.b32.xlu0 %v301, 1
        %v364 = vpop.permute.xlu0 %363
        %365 = vrot.lane.b32.xlu0 %v310, 1
        %v366 = vpop.permute.xlu0 %365
        %367 = vrot.lane.b32.xlu0 %v311, 1
        %v368 = vpop.permute.xlu0 %367
        %369 = vrot.lane.b32.xlu0 %v318, 1
        %v370 = vpop.permute.xlu0 %369
        %371 = vrot.lane.b32.xlu0 %v327, 1
        %v372 = vpop.permute.xlu0 %371
        %373 = vrot.lane.b32.xlu0 %v328, 1
        %v374 = vpop.permute.xlu0 %373
        %375 = vrot.lane.b32.xlu0 %v335, 1
        %v376 = vpop.permute.xlu0 %375
        %377 = vrot.lane.b32.xlu0 %v344, 1
        %v378 = vpop.permute.xlu0 %377
        %379 = vrot.lane.b32.xlu0 %v345, 1
        %v380 = vpop.permute.xlu0 %379
        %381 = vrot.lane.b32.xlu0 %v352, 1
        %v382 = vpop.permute.xlu0 %381
        %383 = vrot.lane.b32.xlu0 %v361, 1
        %v384 = vpop.permute.xlu0 %383
        %385 = vrot.lane.b32.xlu0 %v362, 1
        %v386 = vpop.permute.xlu0 %385
        %vm399 = vcmask 134152
        %vm400 = vsmask.f32 7938
        %vm401 = vmand %vm399, %vm400
        %v402 = vld [vmem:[#allocation2] sm:$0xf]
        %v403 = vsel %vm401, %v364, %v402
        %404 = vst [vmem:[#allocation2] sm:$0xf] %v403
        %vm405 = vcmask 134152
        %406 = vst.msk [vmem:[#allocation2 + $0x4] sm:$0xf] %vm405, %v366
        %vm407 = vcmask 131080
        %vm408 = vmand %vm407, %vm292
        %v409 = vld [vmem:[#allocation2 + $0x8] sm:$0x1]
        %v410 = vsel %vm408, %v368, %v409
        %411 = vst [vmem:[#allocation2 + $0x8] sm:$0x1] %v410
        %v412 = vld [vmem:[#allocation2 + $0xc] sm:$0xf]
        %v413 = vsel %vm401, %v370, %v412
        %414 = vst [vmem:[#allocation2 + $0xc] sm:$0xf] %v413
        %415 = vst.msk [vmem:[#allocation2 + $0x10] sm:$0xf] %vm405, %v372
        %v416 = vld [vmem:[#allocation2 + $0x14] sm:$0x1]
        %v417 = vsel %vm408, %v374, %v416
        %418 = vst [vmem:[#allocation2 + $0x14] sm:$0x1] %v417
        %v419 = vld [vmem:[#allocation2 + $0x18] sm:$0xf]
        %v420 = vsel %vm401, %v376, %v419
        %421 = vst [vmem:[#allocation2 + $0x18] sm:$0xf] %v420
        %422 = vst.msk [vmem:[#allocation2 + $0x1c] sm:$0xf] %vm405, %v378
        %v423 = vld [vmem:[#allocation2 + $0x20] sm:$0x1]
        %v424 = vsel %vm408, %v380, %v423
        %425 = vst [vmem:[#allocation2 + $0x20] sm:$0x1] %v424
        %v426 = vld [vmem:[#allocation2 + $0x24] sm:$0xf]
        %v427 = vsel %vm401, %v382, %v426
        %428 = vst [vmem:[#allocation2 + $0x24] sm:$0xf] %v427
        %429 = vst.msk [vmem:[#allocation2 + $0x28] sm:$0xf] %vm405, %v384
        %v430 = vld [vmem:[#allocation2 + $0x2c] sm:$0x1]
        %v431 = vsel %vm408, %v386, %v430
        %432 = vst [vmem:[#allocation2 + $0x2c] sm:$0x1] %v431
        %s433 = smul.u32 %s27, 8
        %s434 = sshra.s32 %s433, 3
        %s435 = sand.u32 %s433, 7
        %s436 = smul.addr %s434, 4
        %s437 = scalar_lea.vmem [#allocation2], %s436
        %v438 = vld [vmem:[%s437] sm:$0xf]
        %v439 = vld [vmem:[%s437 + $0x4] sm:$0x1]
        %v440 = vld [vmem:[%s437 + $0xc] sm:$0xf]
        %v441 = vld [vmem:[%s437 + $0x10] sm:$0x1]
        %v442 = vld [vmem:[%s437 + $0x18] sm:$0xf]
        %v443 = vld [vmem:[%s437 + $0x1c] sm:$0x1]
        %v444 = vld [vmem:[%s437 + $0x24] sm:$0xf]
        %v445 = vld [vmem:[%s437 + $0x28] sm:$0x1]
        %450 = vrot.lane.b32.xlu0 %v438, 127
        %v451 = vpop.permute.xlu0 %450
        %452 = vrot.lane.b32.xlu0 %v440, 127
        %v453 = vpop.permute.xlu0 %452
        %454 = vrot.lane.b32.xlu0 %v442, 127
        %v455 = vpop.permute.xlu0 %454
        %456 = vrot.lane.b32.xlu0 %v444, 127
        %v457 = vpop.permute.xlu0 %456
        %458 = vrot.lane.b32.xlu0 %v438, 126
        %v459 = vpop.permute.xlu0 %458
        %460 = vrot.lane.b32.xlu0 %v440, 126
        %v461 = vpop.permute.xlu0 %460
        %462 = vrot.lane.b32.xlu0 %v442, 126
        %v463 = vpop.permute.xlu0 %462
        %464 = vrot.lane.b32.xlu0 %v444, 126
        %v465 = vpop.permute.xlu0 %464
        %vm466 = vsmask.f32 3328
        %vm467 = vsmask.f32 7440
        %vm468 = vmor %vm466, %vm467
        %v470 = vshrl.u32 %v438, 16
        %v472 = vrot.slane %v470, 4
        %v473 = vshll.u32 %v438, 16
        %v475 = vrot.slane %v473, 5
        %v476 = vor.u32 %v472, %v475
        %v477 = vrot.slane %v476, 4
        %v479 = vshll.u32 %v439, 16
        %v481 = vrot.slane %v479, 5
        %v482 = vsel %vm468, %v477, %v481
        %v484 = vshrl.u32 %v440, 16
        %v486 = vrot.slane %v484, 4
        %v487 = vshll.u32 %v440, 16
        %v489 = vrot.slane %v487, 5
        %v490 = vor.u32 %v486, %v489
        %v491 = vrot.slane %v490, 4
        %v493 = vshll.u32 %v441, 16
        %v495 = vrot.slane %v493, 5
        %v496 = vsel %vm468, %v491, %v495
        %v498 = vshrl.u32 %v442, 16
        %v500 = vrot.slane %v498, 4
        %v501 = vshll.u32 %v442, 16
        %v503 = vrot.slane %v501, 5
        %v504 = vor.u32 %v500, %v503
        %v505 = vrot.slane %v504, 4
        %v507 = vshll.u32 %v443, 16
        %v509 = vrot.slane %v507, 5
        %v510 = vsel %vm468, %v505, %v509
        %v512 = vshrl.u32 %v444, 16
        %v514 = vrot.slane %v512, 4
        %v515 = vshll.u32 %v444, 16
        %v517 = vrot.slane %v515, 5
        %v518 = vor.u32 %v514, %v517
        %v519 = vrot.slane %v518, 4
        %v521 = vshll.u32 %v445, 16
        %v523 = vrot.slane %v521, 5
        %v524 = vsel %vm468, %v519, %v523
        %525 = vrot.lane.b32.xlu0 %v482, 127
        %v526 = vpop.permute.xlu0 %525
        %527 = vrot.lane.b32.xlu0 %v496, 127
        %v528 = vpop.permute.xlu0 %527
        %529 = vrot.lane.b32.xlu0 %v510, 127
        %v530 = vpop.permute.xlu0 %529
        %531 = vrot.lane.b32.xlu0 %v524, 127
        %v532 = vpop.permute.xlu0 %531
        %533 = vrot.lane.b32.xlu0 %v482, 126
        %v534 = vpop.permute.xlu0 %533
        %535 = vrot.lane.b32.xlu0 %v496, 126
        %v536 = vpop.permute.xlu0 %535
        %537 = vrot.lane.b32.xlu0 %v510, 126
        %v538 = vpop.permute.xlu0 %537
        %539 = vrot.lane.b32.xlu0 %v524, 126
        %v540 = vpop.permute.xlu0 %539
        %vm545 = vcmask 1042432
        %vm546 = vcmask 1046532
        %vm547 = vmor %vm545, %vm546
        %v548 = vrot.slane %v438, 5
        %v549 = vrot.slane %v548, 4
        %v550 = vrot.slane %v439, 5
        %v551 = vsel %vm547, %v549, %v550
        %v552 = vrot.slane %v440, 5
        %v553 = vrot.slane %v552, 4
        %v554 = vrot.slane %v441, 5
        %v555 = vsel %vm547, %v553, %v554
        %v556 = vrot.slane %v442, 5
        %v557 = vrot.slane %v556, 4
        %v558 = vrot.slane %v443, 5
        %v559 = vsel %vm547, %v557, %v558
        %v560 = vrot.slane %v444, 5
        %v561 = vrot.slane %v560, 4
        %v562 = vrot.slane %v445, 5
        %v563 = vsel %vm547, %v561, %v562
        %564 = vrot.lane.b32.xlu0 %v551, 127
        %v565 = vpop.permute.xlu0 %564
        %566 = vrot.lane.b32.xlu0 %v555, 127
        %v567 = vpop.permute.xlu0 %566
        %568 = vrot.lane.b32.xlu0 %v559, 127
        %v569 = vpop.permute.xlu0 %568
        %570 = vrot.lane.b32.xlu0 %v563, 127
        %v571 = vpop.permute.xlu0 %570
        %572 = vrot.lane.b32.xlu0 %v551, 126
        %v573 = vpop.permute.xlu0 %572
        %574 = vrot.lane.b32.xlu0 %v555, 126
        %v575 = vpop.permute.xlu0 %574
        %576 = vrot.lane.b32.xlu0 %v559, 126
        %v577 = vpop.permute.xlu0 %576
        %578 = vrot.lane.b32.xlu0 %v563, 126
        %v579 = vpop.permute.xlu0 %578
        %v580 = vpack.i.b16 %v440, %v438
        %v582 = vpack.i.b16 %v484, %v470
        %v584 = vpack.i.b16 %v444, %v442
        %v586 = vpack.i.b16 %v512, %v498
        %v590 = vpack.i.b16 %v453, %v451
        %v592 = vshrl.u32 %v451, 16
        %v593 = vshrl.u32 %v453, 16
        %v594 = vpack.i.b16 %v593, %v592
        %v598 = vpack.i.b16 %v457, %v455
        %v600 = vshrl.u32 %v455, 16
        %v601 = vshrl.u32 %v457, 16
        %v602 = vpack.i.b16 %v601, %v600
        %v606 = vpack.i.b16 %v461, %v459
        %v608 = vshrl.u32 %v459, 16
        %v609 = vshrl.u32 %v461, 16
        %v610 = vpack.i.b16 %v609, %v608
        %v614 = vpack.i.b16 %v465, %v463
        %v616 = vshrl.u32 %v463, 16
        %v617 = vshrl.u32 %v465, 16
        %v618 = vpack.i.b16 %v617, %v616
        %v622 = vpack.i.b16 %v496, %v482
        %v624 = vshrl.u32 %v482, 16
        %v625 = vshrl.u32 %v496, 16
        %v626 = vpack.i.b16 %v625, %v624
        %v630 = vpack.i.b16 %v524, %v510
        %v632 = vshrl.u32 %v510, 16
        %v633 = vshrl.u32 %v524, 16
        %v634 = vpack.i.b16 %v633, %v632
        %v638 = vpack.i.b16 %v528, %v526
        %v640 = vshrl.u32 %v526, 16
        %v641 = vshrl.u32 %v528, 16
        %v642 = vpack.i.b16 %v641, %v640
        %v646 = vpack.i.b16 %v532, %v530
        %v648 = vshrl.u32 %v530, 16
        %v649 = vshrl.u32 %v532, 16
        %v650 = vpack.i.b16 %v649, %v648
        %v654 = vpack.i.b16 %v536, %v534
        %v656 = vshrl.u32 %v534, 16
        %v657 = vshrl.u32 %v536, 16
        %v658 = vpack.i.b16 %v657, %v656
        %v662 = vpack.i.b16 %v540, %v538
        %v664 = vshrl.u32 %v538, 16
        %v665 = vshrl.u32 %v540, 16
        %v666 = vpack.i.b16 %v665, %v664
        %v670 = vpack.i.b16 %v555, %v551
        %v672 = vshrl.u32 %v551, 16
        %v673 = vshrl.u32 %v555, 16
        %v674 = vpack.i.b16 %v673, %v672
        %v678 = vpack.i.b16 %v563, %v559
        %v680 = vshrl.u32 %v559, 16
        %v681 = vshrl.u32 %v563, 16
        %v682 = vpack.i.b16 %v681, %v680
        %v686 = vpack.i.b16 %v567, %v565
        %v688 = vshrl.u32 %v565, 16
        %v689 = vshrl.u32 %v567, 16
        %v690 = vpack.i.b16 %v689, %v688
        %v694 = vpack.i.b16 %v571, %v569
        %v696 = vshrl.u32 %v569, 16
        %v697 = vshrl.u32 %v571, 16
        %v698 = vpack.i.b16 %v697, %v696
        %v702 = vpack.i.b16 %v575, %v573
        %v703 = vshrl.u32 %v573, 16
        %v704 = vshrl.u32 %v575, 16
        %v705 = vpack.i.b16 %v704, %v703
        %v708 = vpack.i.b16 %v579, %v577
        %v709 = vshrl.u32 %v577, 16
        %v710 = vshrl.u32 %v579, 16
        %v711 = vpack.i.b16 %v710, %v709
        %v712 = vcombine.low %v580, %v590
        %v714 = vunpack.c.l.s4 1983009808
        %v715 = vunpack.c.0.s8 %v714
        %v716 = vlaneseq
        %v717 = vshrl.u32 %v716, 7
        %v718 = vsub.s32 %v715, %v717
        %v719 = vrot.slane %v712, %v718
        %v720 = vcombine.low %v584, %v598
        %v722 = vunpack.c.l.s4 1983009808
        %v723 = vunpack.c.0.s8 %v722
        %v724 = vlaneseq
        %v725 = vshrl.u32 %v724, 7
        %v726 = vsub.s32 %v723, %v725
        %v727 = vrot.slane %v720, %v726
        %v728 = vcombine.low %v719, %v727
        %v729 = vcombine.high %v719, %v727
        %v731 = vunpack.c.l.s4 1934713408
        %v732 = vunpack.c.0.s8 %v731
        %v733 = vlaneseq
        %v734 = vshrl.u32 %v733, 7
        %v735 = vsub.s32 %v732, %v734
        %v736 = vrot.slane %v728, %v735
        %v738 = vunpack.c.l.s4 1934713408
        %v739 = vunpack.c.0.s8 %v738
        %v740 = vlaneseq
        %v741 = vshrl.u32 %v740, 7
        %v742 = vsub.s32 %v739, %v741
        %v743 = vrot.slane %v729, %v742
        %v744 = vcombine.high %v736, 0
        %v745 = vcombine.high %v743, 0
        %v746 = vcombine.low %v582, %v594
        %v748 = vunpack.c.l.s4 1983009808
        %v749 = vunpack.c.0.s8 %v748
        %v750 = vlaneseq
        %v751 = vshrl.u32 %v750, 7
        %v752 = vsub.s32 %v749, %v751
        %v753 = vrot.slane %v746, %v752
        %v754 = vcombine.low %v586, %v602
        %v756 = vunpack.c.l.s4 1983009808
        %v757 = vunpack.c.0.s8 %v756
        %v758 = vlaneseq
        %v759 = vshrl.u32 %v758, 7
        %v760 = vsub.s32 %v757, %v759
        %v761 = vrot.slane %v754, %v760
        %v762 = vcombine.low %v753, %v761
        %v763 = vcombine.high %v753, %v761
        %v765 = vunpack.c.l.s4 1934713408
        %v766 = vunpack.c.0.s8 %v765
        %v767 = vlaneseq
        %v768 = vshrl.u32 %v767, 7
        %v769 = vsub.s32 %v766, %v768
        %v770 = vrot.slane %v762, %v769
        %v772 = vunpack.c.l.s4 1934713408
        %v773 = vunpack.c.0.s8 %v772
        %v774 = vlaneseq
        %v775 = vshrl.u32 %v774, 7
        %v776 = vsub.s32 %v773, %v775
        %v777 = vrot.slane %v763, %v776
        %v778 = vcombine.high %v770, 0
        %v779 = vcombine.high %v777, 0
        %v780 = vcombine.low %v606, %v622
        %v782 = vunpack.c.l.s4 1983009808
        %v783 = vunpack.c.0.s8 %v782
        %v784 = vlaneseq
        %v785 = vshrl.u32 %v784, 7
        %v786 = vsub.s32 %v783, %v785
        %v787 = vrot.slane %v780, %v786
        %v788 = vcombine.low %v614, %v630
        %v790 = vunpack.c.l.s4 1983009808
        %v791 = vunpack.c.0.s8 %v790
        %v792 = vlaneseq
        %v793 = vshrl.u32 %v792, 7
        %v794 = vsub.s32 %v791, %v793
        %v795 = vrot.slane %v788, %v794
        %v796 = vcombine.low %v787, %v795
        %v797 = vcombine.high %v787, %v795
        %v799 = vunpack.c.l.s4 1934713408
        %v800 = vunpack.c.0.s8 %v799
        %v801 = vlaneseq
        %v802 = vshrl.u32 %v801, 7
        %v803 = vsub.s32 %v800, %v802
        %v804 = vrot.slane %v796, %v803
        %v806 = vunpack.c.l.s4 1934713408
        %v807 = vunpack.c.0.s8 %v806
        %v808 = vlaneseq
        %v809 = vshrl.u32 %v808, 7
        %v810 = vsub.s32 %v807, %v809
        %v811 = vrot.slane %v797, %v810
        %v812 = vcombine.high %v804, 0
        %v813 = vcombine.high %v811, 0
        %v814 = vcombine.low %v610, %v626
        %v816 = vunpack.c.l.s4 1983009808
        %v817 = vunpack.c.0.s8 %v816
        %v818 = vlaneseq
        %v819 = vshrl.u32 %v818, 7
        %v820 = vsub.s32 %v817, %v819
        %v821 = vrot.slane %v814, %v820
        %v822 = vcombine.low %v618, %v634
        %v824 = vunpack.c.l.s4 1983009808
        %v825 = vunpack.c.0.s8 %v824
        %v826 = vlaneseq
        %v827 = vshrl.u32 %v826, 7
        %v828 = vsub.s32 %v825, %v827
        %v829 = vrot.slane %v822, %v828
        %v830 = vcombine.low %v821, %v829
        %v831 = vcombine.high %v821, %v829
        %v833 = vunpack.c.l.s4 1934713408
        %v834 = vunpack.c.0.s8 %v833
        %v835 = vlaneseq
        %v836 = vshrl.u32 %v835, 7
        %v837 = vsub.s32 %v834, %v836
        %v838 = vrot.slane %v830, %v837
        %v840 = vunpack.c.l.s4 1934713408
        %v841 = vunpack.c.0.s8 %v840
        %v842 = vlaneseq
        %v843 = vshrl.u32 %v842, 7
        %v844 = vsub.s32 %v841, %v843
        %v845 = vrot.slane %v831, %v844
        %v846 = vcombine.high %v838, 0
        %v847 = vcombine.high %v845, 0
        %v848 = vcombine.low %v638, %v654
        %v850 = vunpack.c.l.s4 1983009808
        %v851 = vunpack.c.0.s8 %v850
        %v852 = vlaneseq
        %v853 = vshrl.u32 %v852, 7
        %v854 = vsub.s32 %v851, %v853
        %v855 = vrot.slane %v848, %v854
        %v856 = vcombine.low %v646, %v662
        %v858 = vunpack.c.l.s4 1983009808
        %v859 = vunpack.c.0.s8 %v858
        %v860 = vlaneseq
        %v861 = vshrl.u32 %v860, 7
        %v862 = vsub.s32 %v859, %v861
        %v863 = vrot.slane %v856, %v862
        %v864 = vcombine.low %v855, %v863
        %v865 = vcombine.high %v855, %v863
        %v867 = vunpack.c.l.s4 1934713408
        %v868 = vunpack.c.0.s8 %v867
        %v869 = vlaneseq
        %v870 = vshrl.u32 %v869, 7
        %v871 = vsub.s32 %v868, %v870
        %v872 = vrot.slane %v864, %v871
        %v874 = vunpack.c.l.s4 1934713408
        %v875 = vunpack.c.0.s8 %v874
        %v876 = vlaneseq
        %v877 = vshrl.u32 %v876, 7
        %v878 = vsub.s32 %v875, %v877
        %v879 = vrot.slane %v865, %v878
        %v880 = vcombine.high %v872, 0
        %v881 = vcombine.high %v879, 0
        %v882 = vcombine.low %v642, %v658
        %v884 = vunpack.c.l.s4 1983009808
        %v885 = vunpack.c.0.s8 %v884
        %v886 = vlaneseq
        %v887 = vshrl.u32 %v886, 7
        %v888 = vsub.s32 %v885, %v887
        %v889 = vrot.slane %v882, %v888
        %v890 = vcombine.low %v650, %v666
        %v892 = vunpack.c.l.s4 1983009808
        %v893 = vunpack.c.0.s8 %v892
        %v894 = vlaneseq
        %v895 = vshrl.u32 %v894, 7
        %v896 = vsub.s32 %v893, %v895
        %v897 = vrot.slane %v890, %v896
        %v898 = vcombine.low %v889, %v897
        %v899 = vcombine.high %v889, %v897
        %v901 = vunpack.c.l.s4 1934713408
        %v902 = vunpack.c.0.s8 %v901
        %v903 = vlaneseq
        %v904 = vshrl.u32 %v903, 7
        %v905 = vsub.s32 %v902, %v904
        %v906 = vrot.slane %v898, %v905
        %v908 = vunpack.c.l.s4 1934713408
        %v909 = vunpack.c.0.s8 %v908
        %v910 = vlaneseq
        %v911 = vshrl.u32 %v910, 7
        %v912 = vsub.s32 %v909, %v911
        %v913 = vrot.slane %v899, %v912
        %v914 = vcombine.high %v906, 0
        %v915 = vcombine.high %v913, 0
        %v916 = vcombine.low %v670, %v686
        %v918 = vunpack.c.l.s4 1983009808
        %v919 = vunpack.c.0.s8 %v918
        %v920 = vlaneseq
        %v921 = vshrl.u32 %v920, 7
        %v922 = vsub.s32 %v919, %v921
        %v923 = vrot.slane %v916, %v922
        %v924 = vcombine.low %v678, %v694
        %v926 = vunpack.c.l.s4 1983009808
        %v927 = vunpack.c.0.s8 %v926
        %v928 = vlaneseq
        %v929 = vshrl.u32 %v928, 7
        %v930 = vsub.s32 %v927, %v929
        %v931 = vrot.slane %v924, %v930
        %v932 = vcombine.low %v923, %v931
        %v933 = vcombine.high %v923, %v931
        %v935 = vunpack.c.l.s4 1934713408
        %v936 = vunpack.c.0.s8 %v935
        %v937 = vlaneseq
        %v938 = vshrl.u32 %v937, 7
        %v939 = vsub.s32 %v936, %v938
        %v940 = vrot.slane %v932, %v939
        %v942 = vunpack.c.l.s4 1934713408
        %v943 = vunpack.c.0.s8 %v942
        %v944 = vlaneseq
        %v945 = vshrl.u32 %v944, 7
        %v946 = vsub.s32 %v943, %v945
        %v947 = vrot.slane %v933, %v946
        %v948 = vcombine.high %v940, 0
        %v949 = vcombine.high %v947, 0
        %v950 = vcombine.low %v674, %v690
        %v952 = vunpack.c.l.s4 1983009808
        %v953 = vunpack.c.0.s8 %v952
        %v954 = vlaneseq
        %v955 = vshrl.u32 %v954, 7
        %v956 = vsub.s32 %v953, %v955
        %v957 = vrot.slane %v950, %v956
        %v958 = vcombine.low %v682, %v698
        %v960 = vunpack.c.l.s4 1983009808
        %v961 = vunpack.c.0.s8 %v960
        %v962 = vlaneseq
        %v963 = vshrl.u32 %v962, 7
        %v964 = vsub.s32 %v961, %v963
        %v965 = vrot.slane %v958, %v964
        %v966 = vcombine.low %v957, %v965
        %v967 = vcombine.high %v957, %v965
        %v969 = vunpack.c.l.s4 1934713408
        %v970 = vunpack.c.0.s8 %v969
        %v971 = vlaneseq
        %v972 = vshrl.u32 %v971, 7
        %v973 = vsub.s32 %v970, %v972
        %v974 = vrot.slane %v966, %v973
        %v976 = vunpack.c.l.s4 1934713408
        %v977 = vunpack.c.0.s8 %v976
        %v978 = vlaneseq
        %v979 = vshrl.u32 %v978, 7
        %v980 = vsub.s32 %v977, %v979
        %v981 = vrot.slane %v967, %v980
        %v982 = vcombine.high %v974, 0
        %v983 = vcombine.high %v981, 0
        %v986 = vunpack.c.l.s4 1983009808
        %v987 = vunpack.c.0.s8 %v986
        %v988 = vlaneseq
        %v989 = vshrl.u32 %v988, 7
        %v990 = vsub.s32 %v987, %v989
        %v991 = vrot.slane %v702, %v990
        %v994 = vunpack.c.l.s4 1983009808
        %v995 = vunpack.c.0.s8 %v994
        %v996 = vlaneseq
        %v997 = vshrl.u32 %v996, 7
        %v998 = vsub.s32 %v995, %v997
        %v999 = vrot.slane %v708, %v998
        %v1000 = vcombine.low %v991, %v999
        %v1001 = vcombine.high %v991, %v999
        %v1003 = vunpack.c.l.s4 1934713408
        %v1004 = vunpack.c.0.s8 %v1003
        %v1005 = vlaneseq
        %v1006 = vshrl.u32 %v1005, 7
        %v1007 = vsub.s32 %v1004, %v1006
        %v1008 = vrot.slane %v1000, %v1007
        %v1010 = vunpack.c.l.s4 1934713408
        %v1011 = vunpack.c.0.s8 %v1010
        %v1012 = vlaneseq
        %v1013 = vshrl.u32 %v1012, 7
        %v1014 = vsub.s32 %v1011, %v1013
        %v1015 = vrot.slane %v1001, %v1014
        %v1016 = vcombine.high %v1008, 0
        %v1017 = vcombine.high %v1015, 0
        %v1020 = vunpack.c.l.s4 1983009808
        %v1021 = vunpack.c.0.s8 %v1020
        %v1022 = vlaneseq
        %v1023 = vshrl.u32 %v1022, 7
        %v1024 = vsub.s32 %v1021, %v1023
        %v1025 = vrot.slane %v705, %v1024
        %v1028 = vunpack.c.l.s4 1983009808
        %v1029 = vunpack.c.0.s8 %v1028
        %v1030 = vlaneseq
        %v1031 = vshrl.u32 %v1030, 7
        %v1032 = vsub.s32 %v1029, %v1031
        %v1033 = vrot.slane %v711, %v1032
        %v1034 = vcombine.low %v1025, %v1033
        %v1035 = vcombine.high %v1025, %v1033
        %v1037 = vunpack.c.l.s4 1934713408
        %v1038 = vunpack.c.0.s8 %v1037
        %v1039 = vlaneseq
        %v1040 = vshrl.u32 %v1039, 7
        %v1041 = vsub.s32 %v1038, %v1040
        %v1042 = vrot.slane %v1034, %v1041
        %v1044 = vunpack.c.l.s4 1934713408
        %v1045 = vunpack.c.0.s8 %v1044
        %v1046 = vlaneseq
        %v1047 = vshrl.u32 %v1046, 7
        %v1048 = vsub.s32 %v1045, %v1047
        %v1049 = vrot.slane %v1035, %v1048
        %v1050 = vcombine.high %v1042, 0
        %v1051 = vcombine.high %v1049, 0
        %v1057 = vunpack.c.l.b16 %v736
        %v1058 = vunpack.c.l.b16 %v804
        %v1059 = vunpack.c.l.b16 %v872
        %v1060 = vunpack.c.l.b16 %v940
        %v1061 = vunpack.c.l.b16 %v1008
        %v1062 = vpack.c.b16 %v1058, %v1057
        %v1063 = vpack.c.b16 %v1060, %v1059
        %v1064 = vpack.c.b16 %v1061, %v1061
        %v1070 = vunpack.c.l.b16 %v770
        %v1071 = vunpack.c.l.b16 %v838
        %v1072 = vunpack.c.l.b16 %v906
        %v1073 = vunpack.c.l.b16 %v974
        %v1074 = vunpack.c.l.b16 %v1042
        %v1075 = vpack.c.b16 %v1071, %v1070
        %v1076 = vpack.c.b16 %v1073, %v1072
        %v1077 = vpack.c.b16 %v1074, %v1074
        %1078 = vrot.lane.b32.xlu0 %v1075, 16
        %v1079 = vpop.permute.xlu0 %1078
        %1080 = vrot.lane.b32.xlu0 %v1076, 16
        %v1081 = vpop.permute.xlu0 %1080
        %1082 = vrot.lane.b32.xlu0 %v1077, 16
        %v1083 = vpop.permute.xlu0 %1082
        %v1089 = vunpack.c.l.b16 %v744
        %v1090 = vunpack.c.l.b16 %v812
        %v1091 = vunpack.c.l.b16 %v880
        %v1092 = vunpack.c.l.b16 %v948
        %v1093 = vunpack.c.l.b16 %v1016
        %v1094 = vpack.c.b16 %v1090, %v1089
        %v1095 = vpack.c.b16 %v1092, %v1091
        %v1096 = vpack.c.b16 %v1093, %v1093
        %1097 = vrot.lane.b32.xlu0 %v1094, 32
        %v1098 = vpop.permute.xlu0 %1097
        %1099 = vrot.lane.b32.xlu0 %v1095, 32
        %v1100 = vpop.permute.xlu0 %1099
        %1101 = vrot.lane.b32.xlu0 %v1096, 32
        %v1102 = vpop.permute.xlu0 %1101
        %v1108 = vunpack.c.l.b16 %v778
        %v1109 = vunpack.c.l.b16 %v846
        %v1110 = vunpack.c.l.b16 %v914
        %v1111 = vunpack.c.l.b16 %v982
        %v1112 = vunpack.c.l.b16 %v1050
        %v1113 = vpack.c.b16 %v1109, %v1108
        %v1114 = vpack.c.b16 %v1111, %v1110
        %v1115 = vpack.c.b16 %v1112, %v1112
        %1116 = vrot.lane.b32.xlu0 %v1113, 48
        %v1117 = vpop.permute.xlu0 %1116
        %1118 = vrot.lane.b32.xlu0 %v1114, 48
        %v1119 = vpop.permute.xlu0 %1118
        %1120 = vrot.lane.b32.xlu0 %v1115, 48
        %v1121 = vpop.permute.xlu0 %1120
        %v1127 = vunpack.c.l.b16 %v743
        %v1128 = vunpack.c.l.b16 %v811
        %v1129 = vunpack.c.l.b16 %v879
        %v1130 = vunpack.c.l.b16 %v947
        %v1131 = vunpack.c.l.b16 %v1015
        %v1132 = vpack.c.b16 %v1128, %v1127
        %v1133 = vpack.c.b16 %v1130, %v1129
        %v1134 = vpack.c.b16 %v1131, %v1131
        %1135 = vrot.lane.b32.xlu0 %v1132, 64
        %v1136 = vpop.permute.xlu0 %1135
        %1137 = vrot.lane.b32.xlu0 %v1133, 64
        %v1138 = vpop.permute.xlu0 %1137
        %1139 = vrot.lane.b32.xlu0 %v1134, 64
        %v1140 = vpop.permute.xlu0 %1139
        %v1146 = vunpack.c.l.b16 %v777
        %v1147 = vunpack.c.l.b16 %v845
        %v1148 = vunpack.c.l.b16 %v913
        %v1149 = vunpack.c.l.b16 %v981
        %v1150 = vunpack.c.l.b16 %v1049
        %v1151 = vpack.c.b16 %v1147, %v1146
        %v1152 = vpack.c.b16 %v1149, %v1148
        %v1153 = vpack.c.b16 %v1150, %v1150
        %1154 = vrot.lane.b32.xlu0 %v1151, 80
        %v1155 = vpop.permute.xlu0 %1154
        %1156 = vrot.lane.b32.xlu0 %v1152, 80
        %v1157 = vpop.permute.xlu0 %1156
        %1158 = vrot.lane.b32.xlu0 %v1153, 80
        %v1159 = vpop.permute.xlu0 %1158
        %v1165 = vunpack.c.l.b16 %v745
        %v1166 = vunpack.c.l.b16 %v813
        %v1167 = vunpack.c.l.b16 %v881
        %v1168 = vunpack.c.l.b16 %v949
        %v1169 = vunpack.c.l.b16 %v1017
        %v1170 = vpack.c.b16 %v1166, %v1165
        %v1171 = vpack.c.b16 %v1168, %v1167
        %v1172 = vpack.c.b16 %v1169, %v1169
        %1173 = vrot.lane.b32.xlu0 %v1170, 96
        %v1174 = vpop.permute.xlu0 %1173
        %1175 = vrot.lane.b32.xlu0 %v1171, 96
        %v1176 = vpop.permute.xlu0 %1175
        %1177 = vrot.lane.b32.xlu0 %v1172, 96
        %v1178 = vpop.permute.xlu0 %1177
        %v1184 = vunpack.c.l.b16 %v779
        %v1185 = vunpack.c.l.b16 %v847
        %v1186 = vunpack.c.l.b16 %v915
        %v1187 = vunpack.c.l.b16 %v983
        %v1188 = vunpack.c.l.b16 %v1051
        %v1189 = vpack.c.b16 %v1185, %v1184
        %v1190 = vpack.c.b16 %v1187, %v1186
        %v1191 = vpack.c.b16 %v1188, %v1188
        %1192 = vrot.lane.b32.xlu0 %v1189, 112
        %v1193 = vpop.permute.xlu0 %1192
        %1194 = vrot.lane.b32.xlu0 %v1190, 112
        %v1195 = vpop.permute.xlu0 %1194
        %1196 = vrot.lane.b32.xlu0 %v1191, 112
        %v1197 = vpop.permute.xlu0 %1196
        %vm1198 = vcmask 130048
        %v1201 = vsel %vm1198, %v1062, %v1079
        %v1204 = vsel %vm1198, %v1063, %v1081
        %v1207 = vsel %vm1198, %v1064, %v1083
        %vm1208 = vcmask 261120
        %v1210 = vsel %vm1208, %v1201, %v1098
        %v1212 = vsel %vm1208, %v1204, %v1100
        %v1214 = vsel %vm1208, %v1207, %v1102
        %vm1215 = vcmask 392192
        %v1217 = vsel %vm1215, %v1210, %v1117
        %v1219 = vsel %vm1215, %v1212, %v1119
        %v1221 = vsel %vm1215, %v1214, %v1121
        %vm1222 = vcmask 523264
        %v1224 = vsel %vm1222, %v1217, %v1136
        %v1226 = vsel %vm1222, %v1219, %v1138
        %v1228 = vsel %vm1222, %v1221, %v1140
        %vm1229 = vcmask 654336
        %v1231 = vsel %vm1229, %v1224, %v1155
        %v1233 = vsel %vm1229, %v1226, %v1157
        %v1235 = vsel %vm1229, %v1228, %v1159
        %vm1236 = vcmask 785408
        %v1238 = vsel %vm1236, %v1231, %v1174
        %v1240 = vsel %vm1236, %v1233, %v1176
        %v1242 = vsel %vm1236, %v1235, %v1178
        %vm1243 = vcmask 916480
        %v1245 = vsel %vm1243, %v1238, %v1193
        %v1248 = vsel %vm1243, %v1240, %v1195
        %v1251 = vsel %vm1243, %v1242, %v1197
        %v1252 = vld [vmem:[#allocation6] sm:$0xf]
        %vm1253 = vcmask 293888
        %v1255 = vsel %vm1253, %v1252, 0
        %vm1257 = vcmask 1041408
        %v1258 = vsel %vm1257, %v1251, 0
        %1260 = vmatprep.subr.bf16.mxu0 0
        %1261 = vmatpush1.bf16.msra.mxu0 %v1245
        %1262 = vmatprep.subr.bf16.mxu0 0
        %1263 = vmatpush1.bf16.msra.mxu0 %v1248
        %1264 = vmatprep.subr.bf16.mxu0 0
        %1265 = vmatpush1.bf16.msra.mxu0 %v1258
        %1266 = vmatprep.subr.bf16.mxu0 0
        %1267 = vmatpush1.bf16.msra.mxu0 0
        %1268 = vmatprep.subr.bf16.mxu0 0
        %1269 = vmatpush1.bf16.msra.mxu0 0
        %1270 = vmatprep.subr.bf16.mxu0 0
        %1271 = vmatpush1.bf16.msra.mxu0 0
        %1272 = vmatprep.subr.bf16.mxu0 0
        %1273 = vmatpush1.bf16.msra.mxu0 0
        %1274 = vmatprep.subr.bf16.mxu0 0
        %1275 = vmatpush1.bf16.msra.mxu0 0
        %1276 = vmatprep.subr.bf16.mxu0 0
        %1277 = vmatpush1.bf16.msra.mxu0 0
        %1278 = vmatprep.subr.bf16.mxu0 0
        %1279 = vmatpush1.bf16.msra.mxu0 0
        %1280 = vmatprep.subr.bf16.mxu0 0
        %1281 = vmatpush1.bf16.msra.mxu0 0
        %1282 = vmatprep.subr.bf16.mxu0 0
        %1283 = vmatpush1.bf16.msra.mxu0 0
        %1284 = vmatprep.subr.bf16.mxu0 0
        %1285 = vmatpush1.bf16.msra.mxu0 0
        %1286 = vmatprep.subr.bf16.mxu0 0
        %1287 = vmatpush1.bf16.msra.mxu0 0
        %1288 = vmatprep.subr.bf16.mxu0 0
        %1289 = vmatpush1.bf16.msra.mxu0 0
        %1290 = vmatprep.subr.bf16.mxu0 0
        %1291 = vmatpush1.bf16.msra.mxu0 0
        %1292 = vmatprep.mubr.bf16.mxu0 0
        %1293 = vmatmul.mubr.bf16.gmra.mrb[0].mxu0 %v1255
        %v1294 = vpop.f32.mrb[0].mxu0
        %v1295 = vadd.f32 0.0, %v1294
        %v1296 = vpop.f32.mrb[0].mxu0
        %v1297 = vpop.f32.mrb[0].mxu0
        %v1298 = vpop.f32.mrb[0].mxu0
        %1299 = vdwg.mxu0
        %v1300 = vpack.c.bf16 %v1295, %v1295
        %1301 = vst [vmem:[%s218] sm:$0xf] %v1300
        %1302 = vadd.xlane.f32.xlu0 %v1295
        %v1303 = vpop.xlane.xlu0 %1302
        %v1304 = vmul.f32 %v1295, %v1295
        %1305 = vadd.xlane.f32.xlu0 %v1304
        %v1306 = vpop.xlane.xlu0 %1305
        %vm1307 = vcmask 7168
        %v1308 = vsel %vm1307, %v1303, %v1306
        %vm1309 = vcmask 15360
        %1310 = vst.msk [vmem:[%s236] sm:$0xff] %vm1309, %v1308
        %s1311 = sand.u32 %s91, 1
        %s1312 = scalar_lea.sflag [#allocation5], %s1311
        %s1313 = sand.u32 %s91, 1
        %s1314 = smul.addr %s1313, 4
        %s1315 = scalar_lea.vmem [#allocation8], %s1314
        %p1316 = scmp.lt.s32.totalorder %s26, 1
        %s1317 = scalar_select %p1316, %s26, 1
        %p1318 = scmp.lt.s32.totalorder %s27, 1
        %s1319 = scalar_select %p1318, %s27, 1
        %s1320 = smul.addr %s1317, 2
        %s1321 = sadd.s32 %s1319, %s1320
        %s1322 = smul.addr %s1321, 8
        %s1323 = scalar_lea.vmem %s3, %s1322
        // Predicated region
        $region37: #{tpu_custom_call.1} parent=27 // pred_check
          %p1324 = pneg %p101
        $region38: #{tpu_custom_call.1} parent=27 // pred_check_branch
          %1326 = sbr.rel (%p1324) target = $region40
        $region39: #{tpu_custom_call.1} parent=27 // pred_region
          %s1328 = ssub.s32 64, 64
          %1329 = vsyncadd %s1312, %s1328
          %s1330 = smul.addr %s26, 2
          %s1331 = sadd.s32 %s27, %s1330
          %s1332 = smul.addr %s1331, 64
          %s1333 = scalar_lea.hbm %s2, %s1332
          %s1335 = sshll.u32 %s1315, 4
          %s1336 = int_to_ptr.vmem [resolvable:$true] %s1335
          %1338 = dma.vmem_to_hbm [thread:$0]  %s1336, 64, %s1333, %s1312
        $region40: #{tpu_custom_call.1} parent=27 // pred_fallthru
          _
        // Predicated region
        $region41: #{tpu_custom_call.1} parent=27 // pred_check
          %p1339 = pneg %p129
        $region42: #{tpu_custom_call.1} parent=27 // pred_check_branch
          %1341 = sbr.rel (%p1339) target = $region44
        $region43: #{tpu_custom_call.1} parent=27 // pred_region
          _
        $region44: #{tpu_custom_call.1} parent=27 // pred_fallthru
          _
      $region28: #{tpu_custom_call.1} parent=5 // pred_fallthru
        _
      %p1342 = scmp.le.s32.totalorder 2, %s17
      // Predicated region
      $region45: #{tpu_custom_call.1} parent=5 // pred_check
        %p1343 = pneg %p1342
      $region46: #{tpu_custom_call.1} parent=5 // pred_check_branch
        %1345 = sbr.rel (%p1343) target = $region48
      $region47: #{tpu_custom_call.1} parent=5 // pred_region
        %s1346 = ssub.s32 %s17, 2
        // Predicated region
        $region49: #{tpu_custom_call.1} parent=47 // pred_check
          %p1347 = pneg %p107
        $region50: #{tpu_custom_call.1} parent=47 // pred_check_branch
          %1349 = sbr.rel (%p1347) target = $region52
        $region51: #{tpu_custom_call.1} parent=47 // pred_region
          %s1350 = sand.u32 %s92, 1
          %s1351 = scalar_lea.sflag [#allocation5], %s1350
          %s1352 = sand.u32 %s92, 1
          %s1353 = smul.addr %s1352, 4
          %s1354 = scalar_lea.vmem [#allocation8], %s1353
          %1355 = dma.done %s1351, 64
        $region52: #{tpu_custom_call.1} parent=47 // pred_fallthru
          _
        // Predicated region
        $region53: #{tpu_custom_call.1} parent=47 // pred_check
          %p1356 = pneg %p135
        $region54: #{tpu_custom_call.1} parent=47 // pred_check_branch
          %1358 = sbr.rel (%p1356) target = $region56
        $region55: #{tpu_custom_call.1} parent=47 // pred_region
          %p1359 = scmp.lt.s32.totalorder %s28, 1
          %s1360 = scalar_select %p1359, %s28, 1
          %p1361 = scmp.lt.s32.totalorder %s29, 1
          %s1362 = scalar_select %p1361, %s29, 1
          %s1363 = smul.addr %s1360, 2
          %s1364 = sadd.s32 %s1362, %s1363
          %s1365 = smul.addr %s1364, 8
          %s1366 = scalar_lea.vmem %s3, %s1365
        $region56: #{tpu_custom_call.1} parent=47 // pred_fallthru
          _
      $region48: #{tpu_custom_call.1} parent=5 // pred_fallthru
        _
    $region6: #{tpu_custom_call.1} parent=1 // loop_footer
      %s21 = sadd.s32 1, %s17
    $region7: #{tpu_custom_call.1} parent=1 // loop_footer_branch
      %16 = sbr.rel target = $region3
    $region8: #{tpu_custom_call.1} parent=1 // loop_exit
      _
    %1367 = vsyncpa [#allocation4], 1
    %s1368 = scalar_lea.sflag [#allocation4], 1
    %1369 = vsyncpa %s1368, 1
    %1370 = vsyncpa [#allocation7], 1
    %1371 = vsyncpa [#allocation5], 1
    %s1372 = scalar_lea.sflag [#allocation5], 1
    %1373 = vsyncpa %s1372, 1

</llo_original>
